<compile_context>
chip_gen: v7x
topology: tpu7x:2x2x1
jax: 0.10.0
libtpu: 0.0.40
codegen_flags: <defaults>
</compile_context>

<pallas_src>
import functools

import jax
import jax.numpy as jnp
from jax.experimental import pallas as pl
from jax.experimental.pallas import tpu as pltpu

EPS = 0.003


def _round_up(x, m):
    return ((x + m - 1) // m) * m


def _mlp_kernel(x_ref, w1_ref, b1_ref, w2_ref, b2_ref, w3_ref, b3_ref, o_ref):
    # fc1: in-kernel bf16 cast (free under DMA slack), MXU matmul, f32 accumulate.
    # Dropout = identity (eval mode); ReLU in f32.
    x_bf16 = x_ref[...].astype(jnp.bfloat16)
    h1 = jnp.dot(x_bf16, w1_ref[...], preferred_element_type=jnp.float32)
    h1 = jnp.maximum(h1 + b1_ref[...], 0.0)                      # (TB, H) f32

    # fc2 (output width 2): two VPU multiplies + lane reductions instead of a
    # 2-wide (>98% masked) MXU matmul.
    h2a = jnp.sum(h1 * w2_ref[0:1, :], axis=1, keepdims=True) + b2_ref[:, 0:1]
    h2b = jnp.sum(h1 * w2_ref[1:2, :], axis=1, keepdims=True) + b2_ref[:, 1:2]
    h2a = jnp.maximum(h2a, 0.0)                                  # (TB, 1)
    h2b = jnp.maximum(h2b, 0.0)                                  # (TB, 1)

    # fc3 (contraction depth 2): rank-2 broadcast update on the VPU.
    out = h2a * w3_ref[0:1, :] + h2b * w3_ref[1:2, :] + b3_ref[...]
    o_ref[...] = out.astype(o_ref.dtype)                         # (TB, out_size)


def pack_params(params):
    """One-time layout conversion from PyTorch (out, in) convention to the
    kernel's layout. Do this once at load time, not per forward call."""
    w1, b1, w2, b2, w3, b3 = params
    return (
        w1.T.astype(jnp.bfloat16),                 # (input, hidden)  bf16 for MXU
        b1.reshape(1, -1).astype(jnp.float32),     # (1, hidden)
        w2.astype(jnp.float32),                    # (2, hidden)  consumed row-wise
        b2.reshape(1, -1).astype(jnp.float32),     # (1, 2)
        w3.T.astype(jnp.float32),                  # (2, output)  consumed row-wise
        b3.reshape(1, -1).astype(jnp.float32),     # (1, output)
    )


@functools.partial(jax.jit, static_argnames=("block_b", "out_dtype"))
def feedforward_nn_forward(x, packed_params, block_b=4096, out_dtype=jnp.float32):
    """3-layer MLP forward as a single batch-tiled Pallas kernel.

    block_b: batch tile (multiple of 8).  4096 is safe on all generations
    (v5e 16 MiB scoped VMEM).  v6e/v7x: 8192-16384 is better; on v7x keep
    pl.cdiv(B, block_b) >= ~4 so both TensorCores get work.
    """
    assert block_b % 8 == 0, "block_b must be a multiple of 8 sublanes"
    w1t, b1, w2, b2, w3t, b3 = packed_params
    B, input_size = x.shape
    hidden = w1t.shape[1]
    out_size = w3t.shape[1]

    # Batch tile: multiple of 8 sublanes; no padding of x — the grid uses cdiv
    # and Pallas masks the partial last block (rows are independent, see header).
    TB = min(block_b, _round_up(B, 8))
    grid = (pl.cdiv(B, TB),)
    const = lambda i: (0, 0)            # weights/biases: same block every step

    flops = 2 * B * (input_size * hidden + hidden * 2 + 2 * out_size)
    bytes_accessed = (
        B * input_size * x.dtype.itemsize                               # x read (f32)
        + sum(a.size * a.dtype.itemsize for a in packed_params)         # weights, once
        + B * out_size * jnp.dtype(out_dtype).itemsize                  # out write
    )

    out = pl.pallas_call(
        _mlp_kernel,
        out_shape=jax.ShapeDtypeStruct((B, out_size), out_dtype),
        grid=grid,
        in_specs=[
            pl.BlockSpec((TB, input_size), lambda i: (i, 0)),   # x: tiled on batch
            pl.BlockSpec((input_size, hidden), const),          # fc1 weight (resident)
            pl.BlockSpec((1, hidden), const),                   # fc1 bias
            pl.BlockSpec((2, hidden), const),                   # fc2 weight
            pl.BlockSpec((1, 2), const),                        # fc2 bias
            pl.BlockSpec((2, out_size), const),                 # fc3 weight
            pl.BlockSpec((1, out_size), const),                 # fc3 bias
        ],
        out_specs=pl.BlockSpec((TB, out_size), lambda i: (i, 0)),
        compiler_params=pltpu.CompilerParams(
            dimension_semantics=("parallel",),  # megacore split on v7x
        ),
        cost_estimate=pl.CostEstimate(
            flops=flops, transcendentals=0, bytes_accessed=bytes_accessed),
    )(x, w1t, b1, w2, b2, w3t, b3)

    return out


def init_params(key, input_size, hidden_size, output_size):
    """Deterministic init mirroring PyTorch defaults:
    Linear: U(-1/sqrt(fan_in), 1/sqrt(fan_in)) for weight and bias.
    fc3.weight overridden with U(-EPS, EPS) as in the module __init__."""
    ks = jax.random.split(key, 7)

    def lin_init(kw, kb, fan_in, fan_out):
        bound = 1.0 / (fan_in ** 0.5)
        w = jax.random.uniform(kw, (fan_out, fan_in), jnp.float32, -bound, bound)
        b = jax.random.uniform(kb, (fan_out,), jnp.float32, -bound, bound)
        return w, b

    w1, b1 = lin_init(ks[0], ks[1], input_size, hidden_size)
    w2, b2 = lin_init(ks[2], ks[3], hidden_size, 2)
    _, b3 = lin_init(ks[4], ks[5], 2, output_size)
    # fc3.weight.data.uniform_(-EPS, EPS)
    w3 = jax.random.uniform(ks[6], (output_size, 2), jnp.float32, -EPS, EPS)
    return (w1, b1, w2, b2, w3, b3)


def reference_forward(x, params):
    """Pure-JAX f32 reference for validation (eval-mode semantics)."""
    w1, b1, w2, b2, w3, b3 = params
    h1 = jnp.maximum(x @ w1.T + b1, 0.0)
    h2 = jnp.maximum(h1 @ w2.T + b2, 0.0)
    return h2 @ w3.T + b3


if __name__ == "__main__":
    key = jax.random.PRNGKey(0)
    k_x1, k_x2, k_p = jax.random.split(key, 3)

    input_size = 32
    hidden_size = 32
    output_size = 4

    params = init_params(k_p, input_size, hidden_size, output_size)
    packed = pack_params(params)   # one-time layout/dtype conversion

    # Case 1: small batch, single tile.
    x1 = jax.random.normal(k_x1, (8, input_size), jnp.float32)
    out1 = jax.block_until_ready(feedforward_nn_forward(x1, packed))
    ref1 = reference_forward(x1, params)
    assert out1.shape == (8, output_size)
    # fc1 runs in bf16 on the MXU (x cast in-kernel); tolerance sized
    # accordingly (error << 2e-3 here because fc3 weights are U(-EPS, EPS)).
    assert jnp.allclose(out1, ref1, atol=2e-3, rtol=2e-3), "mismatch (case 1)"

    # Case 2: ragged batch + multi-step grid — exercises the masked partial
    # last block of the no-pad cdiv grid.
    x2 = jax.random.normal(k_x2, (70, input_size), jnp.float32)
    out2 = jax.block_until_ready(feedforward_nn_forward(x2, packed, block_b=32))
    ref2 = reference_forward(x2, params)
    assert out2.shape == (70, output_size)
    assert jnp.allclose(out2, ref2, atol=2e-3, rtol=2e-3), "mismatch (case 2)"

    print("KERNEL_OK")
</pallas_src>

<mosaic_0001>
module attributes {stable_mosaic.version = 11 : i64} {
  func.func @_mlp_kernel(%arg0: i32, %arg1: memref<8x32xf32, #tpu.memory_space<vmem>>, %arg2: memref<32x32xbf16, #tpu.memory_space<vmem>>, %arg3: memref<1x32xf32, #tpu.memory_space<vmem>>, %arg4: memref<2x32xf32, #tpu.memory_space<vmem>>, %arg5: memref<1x2xf32, #tpu.memory_space<vmem>>, %arg6: memref<2x4xf32, #tpu.memory_space<vmem>>, %arg7: memref<1x4xf32, #tpu.memory_space<vmem>>, %arg8: memref<8x4xf32, #tpu.memory_space<vmem>>) attributes {dimension_semantics = [#tpu.dimension_semantics<parallel>], iteration_bounds = array<i64: 1>, scalar_prefetch = 0 : i64, scratch_operands = 0 : i64, tpu.core_type = #tpu.core_type<tc>, window_params = [{transform_indices = @transform_0, window_bounds = array<i64: 8, 32>}, {pipeline_mode = #tpu.pipeline_mode<synchronous>, transform_indices = @transform_1, window_bounds = array<i64: 32, 32>}, {pipeline_mode = #tpu.pipeline_mode<synchronous>, transform_indices = @transform_2, window_bounds = array<i64: 1, 32>}, {pipeline_mode = #tpu.pipeline_mode<synchronous>, transform_indices = @transform_3, window_bounds = array<i64: 2, 32>}, {pipeline_mode = #tpu.pipeline_mode<synchronous>, transform_indices = @transform_4, window_bounds = array<i64: 1, 2>}, {pipeline_mode = #tpu.pipeline_mode<synchronous>, transform_indices = @transform_5, window_bounds = array<i64: 2, 4>}, {pipeline_mode = #tpu.pipeline_mode<synchronous>, transform_indices = @transform_6, window_bounds = array<i64: 1, 4>}, {transform_indices = @transform_7, window_bounds = array<i64: 8, 4>}]} {
    %c0 = arith.constant 0 : index
    %c0_0 = arith.constant 0 : index
    %0 = vector.load %arg1[%c0, %c0_0] : memref<8x32xf32, #tpu.memory_space<vmem>>, vector<8x32xf32>
    %1 = arith.truncf %0 : vector<8x32xf32> to vector<8x32xbf16>
    %c0_1 = arith.constant 0 : index
    %c0_2 = arith.constant 0 : index
    %2 = vector.load %arg2[%c0_1, %c0_2] : memref<32x32xbf16, #tpu.memory_space<vmem>>, vector<32x32xbf16>
    %cst = arith.constant dense<0.000000e+00> : vector<8x32xf32>
    %3 = tpu.matmul %1, %2, %cst {dimension_numbers = #tpu.dot_dimension_numbers<[1], [0], [0], [1], [0, 0, 1, 1], [], []>} : vector<8x32xbf16>, vector<32x32xbf16>, vector<8x32xf32> -> vector<8x32xf32>
    %c0_3 = arith.constant 0 : index
    %c0_4 = arith.constant 0 : index
    %4 = vector.load %arg3[%c0_3, %c0_4] : memref<1x32xf32, #tpu.memory_space<vmem>>, vector<1x32xf32>
    %5 = vector.broadcast %4 : vector<1x32xf32> to vector<8x32xf32>
    %6 = arith.addf %3, %5 : vector<8x32xf32>
    %cst_5 = arith.constant 0.000000e+00 : f32
    %7 = vector.broadcast %cst_5 : f32 to vector<8x32xf32>
    %8 = arith.maximumf %6, %7 : vector<8x32xf32>
    %c0_6 = arith.constant 0 : index
    %c0_7 = arith.constant 0 : index
    %9 = vector.load %arg4[%c0_6, %c0_7] : memref<2x32xf32, #tpu.memory_space<vmem>>, vector<1x32xf32>
    %10 = vector.broadcast %9 : vector<1x32xf32> to vector<8x32xf32>
    %11 = arith.mulf %8, %10 : vector<8x32xf32>
    %cst_8 = arith.constant dense<0.000000e+00> : vector<8xf32>
    %12 = vector.multi_reduction <add>, %11, %cst_8 [1] : vector<8x32xf32> to vector<8xf32>
    %13 = vector.shape_cast %12 : vector<8xf32> to vector<8x1xf32>
    %c0_9 = arith.constant 0 : index
    %c0_10 = arith.constant 0 : index
    %14 = vector.load %arg5[%c0_9, %c0_10] : memref<1x2xf32, #tpu.memory_space<vmem>>, vector<1x1xf32>
    %15 = vector.broadcast %14 : vector<1x1xf32> to vector<8x1xf32>
    %16 = arith.addf %13, %15 : vector<8x1xf32>
    %c1 = arith.constant 1 : index
    %c0_11 = arith.constant 0 : index
    %17 = vector.load %arg4[%c1, %c0_11] : memref<2x32xf32, #tpu.memory_space<vmem>>, vector<1x32xf32>
    %18 = vector.broadcast %17 : vector<1x32xf32> to vector<8x32xf32>
    %19 = arith.mulf %8, %18 : vector<8x32xf32>
    %cst_12 = arith.constant dense<0.000000e+00> : vector<8xf32>
    %20 = vector.multi_reduction <add>, %19, %cst_12 [1] : vector<8x32xf32> to vector<8xf32>
    %21 = vector.shape_cast %20 : vector<8xf32> to vector<8x1xf32>
    %c0_13 = arith.constant 0 : index
    %c1_14 = arith.constant 1 : index
    %22 = vector.load %arg5[%c0_13, %c1_14] : memref<1x2xf32, #tpu.memory_space<vmem>>, vector<1x1xf32>
    %23 = vector.broadcast %22 : vector<1x1xf32> to vector<8x1xf32>
    %24 = arith.addf %21, %23 : vector<8x1xf32>
    %cst_15 = arith.constant 0.000000e+00 : f32
    %25 = vector.broadcast %cst_15 : f32 to vector<8x1xf32>
    %26 = arith.maximumf %16, %25 : vector<8x1xf32>
    %cst_16 = arith.constant 0.000000e+00 : f32
    %27 = vector.broadcast %cst_16 : f32 to vector<8x1xf32>
    %28 = arith.maximumf %24, %27 : vector<8x1xf32>
    %c0_17 = arith.constant 0 : index
    %c0_18 = arith.constant 0 : index
    %29 = vector.load %arg6[%c0_17, %c0_18] : memref<2x4xf32, #tpu.memory_space<vmem>>, vector<1x4xf32>
    %30 = vector.broadcast %26 : vector<8x1xf32> to vector<8x4xf32>
    %31 = vector.broadcast %29 : vector<1x4xf32> to vector<8x4xf32>
    %32 = arith.mulf %30, %31 : vector<8x4xf32>
    %c1_19 = arith.constant 1 : index
    %c0_20 = arith.constant 0 : index
    %33 = vector.load %arg6[%c1_19, %c0_20] : memref<2x4xf32, #tpu.memory_space<vmem>>, vector<1x4xf32>
    %34 = vector.broadcast %28 : vector<8x1xf32> to vector<8x4xf32>
    %35 = vector.broadcast %33 : vector<1x4xf32> to vector<8x4xf32>
    %36 = arith.mulf %34, %35 : vector<8x4xf32>
    %37 = arith.addf %32, %36 : vector<8x4xf32>
    %c0_21 = arith.constant 0 : index
    %c0_22 = arith.constant 0 : index
    %38 = vector.load %arg7[%c0_21, %c0_22] : memref<1x4xf32, #tpu.memory_space<vmem>>, vector<1x4xf32>
    %39 = vector.broadcast %38 : vector<1x4xf32> to vector<8x4xf32>
    %40 = arith.addf %37, %39 : vector<8x4xf32>
    %c0_23 = arith.constant 0 : index
    %c0_24 = arith.constant 0 : index
    %41 = vector.load %arg8[%c0_23, %c0_24] : memref<8x4xf32, #tpu.memory_space<vmem>>, vector<8x4xf32>
    tpu.vector_store %arg8[%c0_23, %c0_24], %40 {strides = array<i32>} : memref<8x4xf32, #tpu.memory_space<vmem>>, vector<8x4xf32>,
    return
  }
  func.func @transform_0(%arg0: i32) -> (i32, i32) {
    %c0_i32 = arith.constant 0 : i32
    %c0_i32_0 = arith.constant 0 : i32
    return %arg0, %c0_i32 : i32, i32
  }
  func.func @transform_1(%arg0: i32) -> (i32, i32) {
    %c0_i32 = arith.constant 0 : i32
    %c0_i32_0 = arith.constant 0 : i32
    %c0_i32_1 = arith.constant 0 : i32
    return %c0_i32, %c0_i32_0 : i32, i32
  }
  func.func @transform_2(%arg0: i32) -> (i32, i32) {
    %c0_i32 = arith.constant 0 : i32
    %c0_i32_0 = arith.constant 0 : i32
    %c0_i32_1 = arith.constant 0 : i32
    return %c0_i32, %c0_i32_0 : i32, i32
  }
  func.func @transform_3(%arg0: i32) -> (i32, i32) {
    %c0_i32 = arith.constant 0 : i32
    %c0_i32_0 = arith.constant 0 : i32
    %c0_i32_1 = arith.constant 0 : i32
    return %c0_i32, %c0_i32_0 : i32, i32
  }
  func.func @transform_4(%arg0: i32) -> (i32, i32) {
    %c0_i32 = arith.constant 0 : i32
    %c0_i32_0 = arith.constant 0 : i32
    %c0_i32_1 = arith.constant 0 : i32
    return %c0_i32, %c0_i32_0 : i32, i32
  }
  func.func @transform_5(%arg0: i32) -> (i32, i32) {
    %c0_i32 = arith.constant 0 : i32
    %c0_i32_0 = arith.constant 0 : i32
    %c0_i32_1 = arith.constant 0 : i32
    return %c0_i32, %c0_i32_0 : i32, i32
  }
  func.func @transform_6(%arg0: i32) -> (i32, i32) {
    %c0_i32 = arith.constant 0 : i32
    %c0_i32_0 = arith.constant 0 : i32
    %c0_i32_1 = arith.constant 0 : i32
    return %c0_i32, %c0_i32_0 : i32, i32
  }
  func.func @transform_7(%arg0: i32) -> (i32, i32) {
    %c0_i32 = arith.constant 0 : i32
    %c0_i32_0 = arith.constant 0 : i32
    return %arg0, %c0_i32 : i32, i32
  }
}

</mosaic_0001>

<llo_original>
// kernel: feedforward_nn_forward.1
$region0: #{feedforward_nn_forward.1}
  #allocation0 [shape = 'u32[]', space=smem, size = 0x4, offset = 0x4, fixed_abs, tag = 'smem constant byte address 0x4 - core index']
  #allocation1 [shape = 'u32[144,128]{1,0:T(1,128)}', space=vmem, size = 0x12000, scoped, tag = 'internal scratch']
  %s0 = inlined_call_operand.hbm [shape: f32[8,32], index: 0, kind: input, shape index: {}]
  %s1 = inlined_call_operand.hbm [shape: bf16[32,32], index: 1, kind: input, shape index: {}]
  %s2 = inlined_call_operand.vmem [shape: f32[1,32], index: 2, kind: input, shape index: {}]
  %s3 = inlined_call_operand.vmem [shape: f32[2,32], index: 3, kind: input, shape index: {}]
  %s4 = inlined_call_operand.vmem [shape: f32[1,2], index: 4, kind: input, shape index: {}]
  %s5 = inlined_call_operand.vmem [shape: f32[2,4], index: 5, kind: input, shape index: {}]
  %s6 = inlined_call_operand.vmem [shape: f32[1,4], index: 6, kind: input, shape index: {}]
  %s7 = inlined_call_operand.vmem [shape: f32[8,4], index: 7, kind: output, shape index: {}]
  %s8 = sld [smem:[#allocation0]]
  $region46: #{feedforward_nn_forward.1} parent=0
    _
  %s10 = ssub.s32 1, %s8
  %s11 = scalar_select 0, %s10, %s8
  $region1: #{feedforward_nn_forward.1} parent=0
    #allocation2 [shape = 'u8[4096]{0}', space=vmem, size = 0x1000, scoped, tag = 'input window, operand 0, single buffered']
    #allocation3 [shape = 's32[1]{0}', space=sflag, size = 0x4, scoped, tag = 'scoped memory for feedforward_nn_forward.1']
    #allocation4 [shape = 'u8[8192]{0}', space=vmem, size = 0x2000, scoped, tag = 'input window, operand 1, single buffered']
    #allocation5 [shape = 's32[1]{0}', space=sflag, size = 0x4, scoped, tag = 'scoped memory for feedforward_nn_forward.1']
    %12 = vsyncpa [#allocation3], 0
    %13 = vsyncpa [#allocation5], 0
    // Predicated region
    $region2: #{feedforward_nn_forward.1} parent=1 // pred_check
      _
    $region3: #{feedforward_nn_forward.1} parent=1 // pred_check_branch
      %15 = sbr.rel (0) target = $region5
    $region4: #{feedforward_nn_forward.1} parent=1 // pred_region
      %s17 = ssub.s32 128, 128
      %18 = vsyncadd [#allocation3], %s17
      %s20 = sshll.u32 [#allocation2], 4
      %s21 = int_to_ptr.vmem [resolvable:$true] %s20
      %23 = dma.hbm_to_vmem [thread:$0]  %s0, 128, %s21, [#allocation3]
    $region5: #{feedforward_nn_forward.1} parent=1 // pred_fallthru
      _
    // Predicated region
    $region6: #{feedforward_nn_forward.1} parent=1 // pred_check
      _
    $region7: #{feedforward_nn_forward.1} parent=1 // pred_check_branch
      %25 = sbr.rel (0) target = $region9
    $region8: #{feedforward_nn_forward.1} parent=1 // pred_region
      %s27 = ssub.s32 256, 256
      %28 = vsyncadd [#allocation5], %s27
      %s29 = sshll.u32 [#allocation4], 4
      %s30 = int_to_ptr.vmem [resolvable:$true] %s29
      %35 = dma.hbm_to_vmem [thread:$0]  %s1, 256, %s30, [#allocation5], 64, 64, 4
    $region9: #{feedforward_nn_forward.1} parent=1 // pred_fallthru
      _
    // Predicated region
    $region10: #{feedforward_nn_forward.1} parent=1 // pred_check
      _
    $region11: #{feedforward_nn_forward.1} parent=1 // pred_check_branch
      %37 = sbr.rel (0) target = $region13
    $region12: #{feedforward_nn_forward.1} parent=1 // pred_region
      _
    $region13: #{feedforward_nn_forward.1} parent=1 // pred_fallthru
      _
    // Predicated region
    $region14: #{feedforward_nn_forward.1} parent=1 // pred_check
      _
    $region15: #{feedforward_nn_forward.1} parent=1 // pred_check_branch
      %39 = sbr.rel (0) target = $region17
    $region16: #{feedforward_nn_forward.1} parent=1 // pred_region
      _
    $region17: #{feedforward_nn_forward.1} parent=1 // pred_fallthru
      _
    // Predicated region
    $region18: #{feedforward_nn_forward.1} parent=1 // pred_check
      _
    $region19: #{feedforward_nn_forward.1} parent=1 // pred_check_branch
      %41 = sbr.rel (0) target = $region21
    $region20: #{feedforward_nn_forward.1} parent=1 // pred_region
      _
    $region21: #{feedforward_nn_forward.1} parent=1 // pred_fallthru
      _
    // Predicated region
    $region22: #{feedforward_nn_forward.1} parent=1 // pred_check
      _
    $region23: #{feedforward_nn_forward.1} parent=1 // pred_check_branch
      %43 = sbr.rel (0) target = $region25
    $region24: #{feedforward_nn_forward.1} parent=1 // pred_region
      _
    $region25: #{feedforward_nn_forward.1} parent=1 // pred_fallthru
      _
    // Predicated region
    $region26: #{feedforward_nn_forward.1} parent=1 // pred_check
      _
    $region27: #{feedforward_nn_forward.1} parent=1 // pred_check_branch
      %45 = sbr.rel (0) target = $region29
    $region28: #{feedforward_nn_forward.1} parent=1 // pred_region
      _
    $region29: #{feedforward_nn_forward.1} parent=1 // pred_fallthru
      _
    // Predicated region
    $region30: #{feedforward_nn_forward.1} parent=1 // pred_check
      _
    $region31: #{feedforward_nn_forward.1} parent=1 // pred_check_branch
      %47 = sbr.rel (0) target = $region33
    $region32: #{feedforward_nn_forward.1} parent=1 // pred_region
      %48 = dma.done [#allocation3], 128
    $region33: #{feedforward_nn_forward.1} parent=1 // pred_fallthru
      _
    // Predicated region
    $region34: #{feedforward_nn_forward.1} parent=1 // pred_check
      _
    $region35: #{feedforward_nn_forward.1} parent=1 // pred_check_branch
      %50 = sbr.rel (0) target = $region37
    $region36: #{feedforward_nn_forward.1} parent=1 // pred_region
      %51 = dma.done [#allocation5], 256
    $region37: #{feedforward_nn_forward.1} parent=1 // pred_fallthru
      _
    %v53 = vld [vmem:[#allocation2] sm:$0xff]
    %v54 = vpack.c.bf16 %v53, %v53
    %v55 = vld [vmem:[#allocation4] sm:$0xf]
    %v56 = vld [vmem:[#allocation4 + $0x4] sm:$0xf]
    %v57 = vld [vmem:[#allocation4 + $0x8] sm:$0xf]
    %v58 = vld [vmem:[#allocation4 + $0xc] sm:$0xf]
    %v59 = vld [vmem:[%s2] sm:$0x1]
    %v61 = vlaneseq
    %v62 = vshrl.u32 %v61, 7
    %v63 = vsub.s32 0, %v62
    %v64 = vrot.slane %v59, %v63
    %v70 = vunpack.c.l.b16 %v55
    %v71 = vunpack.c.l.b16 %v56
    %v72 = vunpack.c.l.b16 %v57
    %v73 = vunpack.c.l.b16 %v58
    %v74 = vpack.c.b16 %v71, %v70
    %v75 = vpack.c.b16 %v73, %v72
    %vm78 = vcmask 261120
    %v80 = vsel %vm78, %v54, 0
    %82 = vmatprep.subr.bf16.mxu0 0
    %83 = vmatpush1.bf16.msra.mxu0 %v74
    %84 = vmatprep.subr.bf16.mxu0 0
    %85 = vmatpush1.bf16.msra.mxu0 %v75
    %86 = vmatprep.subr.bf16.mxu0 0
    %87 = vmatpush1.bf16.msra.mxu0 0
    %88 = vmatprep.subr.bf16.mxu0 0
    %89 = vmatpush1.bf16.msra.mxu0 0
    %90 = vmatprep.subr.bf16.mxu0 0
    %91 = vmatpush1.bf16.msra.mxu0 0
    %92 = vmatprep.subr.bf16.mxu0 0
    %93 = vmatpush1.bf16.msra.mxu0 0
    %94 = vmatprep.subr.bf16.mxu0 0
    %95 = vmatpush1.bf16.msra.mxu0 0
    %96 = vmatprep.subr.bf16.mxu0 0
    %97 = vmatpush1.bf16.msra.mxu0 0
    %98 = vmatprep.subr.bf16.mxu0 0
    %99 = vmatpush1.bf16.msra.mxu0 0
    %100 = vmatprep.subr.bf16.mxu0 0
    %101 = vmatpush1.bf16.msra.mxu0 0
    %102 = vmatprep.subr.bf16.mxu0 0
    %103 = vmatpush1.bf16.msra.mxu0 0
    %104 = vmatprep.subr.bf16.mxu0 0
    %105 = vmatpush1.bf16.msra.mxu0 0
    %106 = vmatprep.subr.bf16.mxu0 0
    %107 = vmatpush1.bf16.msra.mxu0 0
    %108 = vmatprep.subr.bf16.mxu0 0
    %109 = vmatpush1.bf16.msra.mxu0 0
    %110 = vmatprep.subr.bf16.mxu0 0
    %111 = vmatpush1.bf16.msra.mxu0 0
    %112 = vmatprep.subr.bf16.mxu0 0
    %113 = vmatpush1.bf16.msra.mxu0 0
    %114 = vmatprep.mubr.bf16.mxu0 0
    %115 = vmatmul.mubr.bf16.gmra.mrb[0].mxu0 %v80
    %v116 = vpop.f32.mrb[0].mxu0
    %v117 = vadd.f32 %v64, %v116
    %v118 = vpop.f32.mrb[0].mxu0
    %v119 = vpop.f32.mrb[0].mxu0
    %v120 = vpop.f32.mrb[0].mxu0
    %121 = vdwg.mxu0
    %v122 = vmax.f32 %v117, 0.0
    %v123 = vld [vmem:[%s3] sm:$0x1]
    %v124 = vlaneseq
    %v125 = vshrl.u32 %v124, 7
    %v126 = vsub.s32 0, %v125
    %v127 = vrot.slane %v123, %v126
    %v128 = vmul.f32 %v122, %v127
    %v129 = vsel %vm78, %v128, 0.0
    %130 = vadd.xlane.f32.xlu0 %v129
    %v131 = vpop.xlane.xlu0 %130
    %v132 = vld [vmem:[%s4] sm:$0x1]
    %v134 = vlaneseq
    %v135 = vshrl.u32 %v134, 7
    %v136 = vsub.s32 0, %v135
    %v137 = vrot.slane %v132, %v136
    %v139 = vadd.f32 %v131, %v137
    %v140 = vld [vmem:[%s3 + $0x1] sm:$0x1]
    %v141 = vlaneseq
    %v142 = vshrl.u32 %v141, 7
    %v143 = vsub.s32 0, %v142
    %v144 = vrot.slane %v140, %v143
    %v145 = vmul.f32 %v122, %v144
    %v146 = vsel %vm78, %v145, 0.0
    %147 = vadd.xlane.f32.xlu0 %v146
    %v148 = vpop.xlane.xlu0 %147
    %v149 = vadd.f32 %v148, %v137
    %v150 = vmax.f32 %v139, 0.0
    %v151 = vmax.f32 %v149, 0.0
    %v152 = vld [vmem:[%s5] sm:$0x1]
    %154 = vset.pattern.permute.xlu0 0
    %155 = vperm.xlu0 %154, %v150
    %v156 = vpop.permute.xlu0 %155
    %v158 = vlaneseq
    %v159 = vshrl.u32 %v158, 7
    %v160 = vsub.s32 0, %v159
    %v161 = vrot.slane %v152, %v160
    %v162 = vmul.f32 %v156, %v161
    %v163 = vld [vmem:[%s5 + $0x1] sm:$0x1]
    %165 = vset.pattern.permute.xlu0 1
    %166 = vperm.xlu0 %165, %v151
    %v167 = vpop.permute.xlu0 %166
    %v169 = vlaneseq
    %v170 = vshrl.u32 %v169, 7
    %v171 = vsub.s32 0, %v170
    %v172 = vrot.slane %v163, %v171
    %v173 = vmul.f32 %v167, %v172
    %v174 = vadd.f32 %v162, %v173
    %v175 = vld [vmem:[%s6] sm:$0x1]
    %v177 = vlaneseq
    %v178 = vshrl.u32 %v177, 7
    %v179 = vsub.s32 0, %v178
    %v180 = vrot.slane %v175, %v179
    %v182 = vadd.f32 %v174, %v180
    %vm183 = vcmask 31744
    %184 = vst.msk [vmem:[%s7] sm:$0xff] %vm183, %v182
    // Predicated region
    $region38: #{feedforward_nn_forward.1} parent=1 // pred_check
      _
    $region39: #{feedforward_nn_forward.1} parent=1 // pred_check_branch
      %186 = sbr.rel (0) target = $region41
    $region40: #{feedforward_nn_forward.1} parent=1 // pred_region
      _
    $region41: #{feedforward_nn_forward.1} parent=1 // pred_fallthru
      _
    // Predicated region
    $region42: #{feedforward_nn_forward.1} parent=1 // pred_check
      _
    $region43: #{feedforward_nn_forward.1} parent=1 // pred_check_branch
      %188 = sbr.rel (0) target = $region45
    $region44: #{feedforward_nn_forward.1} parent=1 // pred_region
      _
    $region45: #{feedforward_nn_forward.1} parent=1 // pred_fallthru
      _
    %189 = vsyncpa [#allocation3], 1
    %190 = vsyncpa [#allocation5], 1

</llo_original>
